<compile_context>
chip_gen: v7x
topology: tpu7x:2x2x1
jax: 0.10.0
libtpu: 0.0.40
codegen_flags: <defaults>
</compile_context>

<pallas_src>
import functools

import jax
import jax.numpy as jnp
import numpy as np
from jax.experimental import pallas as pl
from jax.experimental.pallas import tpu as pltpu


def _round_up(x, m):
    return (x + m - 1) // m * m


def _bce_partial_kernel(x_ref, xd_ref, out_ref, *, n_valid_rows, need_mask,
                        reduce_sublanes):
    """Per-tile BCE partial sums.

    x_ref / xd_ref : (tm, cols) tile of targets / predictions (native dtype).
    out_ref        : (8, cols) sublane-reduced partial-sum slab, or (tm, cols)
                     raw BCE for the degenerate tiny-batch path.
    """
    x = x_ref[...].astype(jnp.float32)
    xd = xd_ref[...].astype(jnp.float32)

    # PyTorch's binary_cross_entropy clamps the log terms at -100.
    log_xd = jnp.maximum(jnp.log(xd), -100.0)
    log_1m_xd = jnp.maximum(jnp.log(1.0 - xd), -100.0)
    bce = -(x * log_xd + (1.0 - x) * log_1m_xd)

    if need_mask:
        # Ragged last tile: rows past the array edge hold undefined data (log() of
        # it may be NaN/Inf), so select them out rather than multiply by a mask.
        tm = x_ref.shape[0]
        row = jax.lax.broadcasted_iota(jnp.int32, bce.shape, 0) + pl.program_id(0) * tm
        bce = jnp.where(row < n_valid_rows, bce, 0.0)

    if reduce_sublanes:
        # VPU-only sublane-group reduction to a lane-dense (8, cols) slab.
        out_ref[...] = jnp.sum(bce.reshape(-1, 8, bce.shape[-1]), axis=0)
    else:
        out_ref[...] = bce


def vae_loss(X, X_dash, q_mu, q_logsigma2, *, block_rows=None,
             block_bytes=2 * 1024 * 1024):
    """Pallas VAE ELBO loss.  Returns LB of shape (N,), matching the PyTorch module."""
    N, _ = q_mu.shape
    D = int(np.prod(X.shape[1:]))
    total = N * D
    itemsize = jnp.dtype(X.dtype).itemsize

    # Row-major reshapes are free (no data movement / no pad copies).
    x2 = X.reshape(N, D)
    xd2 = X_dash.reshape(N, D)

    if total % 128 == 0:
        # Fully lane-dense stream: (total/128, 128).  For D=784 this is N % 8 == 0.
        rows, cols = total // 128, 128
        x_view = x2.reshape(rows, cols)
        xd_view = xd2.reshape(rows, cols)
    else:
        # Fallback: one sample per row (784 lanes pad to 896 in VMEM, but the HBM
        # stream -- what we are bound on -- is identical).
        rows, cols = N, D
        x_view, xd_view = x2, xd2

    if rows < 8:
        # Degenerate tiny batch: one exact tile (block == full array), no reduction.
        tm = rows
        reduce_sublanes = False
    else:
        if block_rows is not None:
            cap = max(8, (block_rows // 8) * 8)
        else:
            # ~block_bytes per input block; 2 inputs x 2 pipeline buffers stays
            # well inside the default scoped VMEM on v5e/v6e/v7x.
            cap = max(8, (block_bytes // (cols * itemsize)) // 8 * 8)
        tm = min(_round_up(rows, 8), cap)
        if rows >= 16 and (rows + tm - 1) // tm < 2:
            # Keep >= 2 grid steps: enables DMA/compute overlap and gives both
            # TensorCores work on v7x (the grid axis is "parallel").
            tm = _round_up((rows + 1) // 2, 8)
        reduce_sublanes = True

    num_tiles = (rows + tm - 1) // tm
    need_mask = (num_tiles * tm) != rows
    out_blk_rows = 8 if reduce_sublanes else tm
    out_rows = num_tiles * out_blk_rows

    kernel = functools.partial(
        _bce_partial_kernel,
        n_valid_rows=rows,
        need_mask=need_mask,
        reduce_sublanes=reduce_sublanes,
    )

    bce_partials = pl.pallas_call(
        kernel,
        out_shape=jax.ShapeDtypeStruct((out_rows, cols), jnp.float32),
        grid=(num_tiles,),
        in_specs=[
            pl.BlockSpec((tm, cols), lambda i: (i, 0)),
            pl.BlockSpec((tm, cols), lambda i: (i, 0)),
        ],
        out_specs=pl.BlockSpec((out_blk_rows, cols), lambda i: (i, 0)),
        compiler_params=pltpu.CompilerParams(
            dimension_semantics=("parallel",),
        ),
        cost_estimate=pl.CostEstimate(
            flops=10 * total,
            transcendentals=2 * total,
            bytes_accessed=2 * total * itemsize + out_rows * cols * 4,
        ),
    )(x_view, xd_view)

    # Reconstruction mean (size_average=True -> / (N * D)); tree-style over slabs.
    recon = jnp.sum(bce_partials) / (float(N) * float(D))

    # KL term touches only (N, Z) ~ 1% of the bytes -> plain JAX in the wrapper,
    # keeping narrow (tm, Z)/(tm, 1) blocks out of the streaming kernel.
    mu = q_mu.astype(jnp.float32)
    ls = q_logsigma2.astype(jnp.float32)
    kl = -0.5 * jnp.sum(1.0 + ls - mu * mu - jnp.exp(ls), axis=1)
    kl = kl / float(N) / 784.0   # 784 hardcoded -- faithful to the PyTorch module

    return recon + kl


def vae_loss_ref(X, X_dash, q_mu, q_logsigma2):
    """Pure-JAX reference of the PyTorch forward (for correctness check)."""
    N = q_mu.shape[0]
    x = X.reshape(N, -1).astype(jnp.float32)
    xd = X_dash.reshape(N, -1).astype(jnp.float32)
    bce = -(x * jnp.maximum(jnp.log(xd), -100.0)
            + (1.0 - x) * jnp.maximum(jnp.log(1.0 - xd), -100.0))
    recon = jnp.mean(bce)
    kl = -0.5 * jnp.sum(1.0 + q_logsigma2 - q_mu ** 2 - jnp.exp(q_logsigma2), axis=1)
    kl = kl / N / 784.0
    return recon + kl


if __name__ == "__main__":
    key = jax.random.PRNGKey(0)
    k1, k2, k3, k4, k5, k6, k7, k8 = jax.random.split(key, 8)

    # --- case 1: tiny batch, N not a multiple of 8 -> fallback (N, 784) layout,
    #     single exact tile, no padding ---
    N, H, W, Z = 4, 28, 28, 8
    X = jax.random.uniform(k1, (N, H, W), dtype=jnp.float32)
    X_dash = jax.nn.sigmoid(jax.random.normal(k2, (N, H, W), dtype=jnp.float32))
    q_mu = 0.5 * jax.random.normal(k3, (N, Z), dtype=jnp.float32)
    q_logsigma2 = 0.5 * jax.random.normal(k4, (N, Z), dtype=jnp.float32)

    lb = jax.block_until_ready(vae_loss(X, X_dash, q_mu, q_logsigma2))
    lb_ref = jax.block_until_ready(vae_loss_ref(X, X_dash, q_mu, q_logsigma2))
    np.testing.assert_allclose(np.asarray(lb), np.asarray(lb_ref), rtol=1e-5, atol=1e-6)

    # --- case 2: N % 8 == 0 -> lane-dense flat (N*784/128, 128) stream,
    #     multi-tile "parallel" grid with a ragged (masked) last tile ---
    N2 = 24
    X2 = jax.random.uniform(k5, (N2, H, W), dtype=jnp.float32)
    X2_dash = jax.nn.sigmoid(jax.random.normal(k6, (N2, H, W), dtype=jnp.float32))
    mu2 = 0.5 * jax.random.normal(k7, (N2, Z), dtype=jnp.float32)
    ls2 = 0.5 * jax.random.normal(k8, (N2, Z), dtype=jnp.float32)

    lb2 = jax.block_until_ready(vae_loss(X2, X2_dash, mu2, ls2, block_rows=64))
    lb2_ref = jax.block_until_ready(vae_loss_ref(X2, X2_dash, mu2, ls2))
    np.testing.assert_allclose(np.asarray(lb2), np.asarray(lb2_ref), rtol=1e-5, atol=1e-6)

    print("KERNEL_OK")
</pallas_src>

<mosaic_0001>
module attributes {stable_mosaic.version = 11 : i64} {
  func.func @_bce_partial_kernel(%arg0: i32, %arg1: memref<4x784xf32, #tpu.memory_space<vmem>>, %arg2: memref<4x784xf32, #tpu.memory_space<vmem>>, %arg3: memref<4x784xf32, #tpu.memory_space<vmem>>) attributes {dimension_semantics = [#tpu.dimension_semantics<parallel>], iteration_bounds = array<i64: 1>, scalar_prefetch = 0 : i64, scratch_operands = 0 : i64, tpu.core_type = #tpu.core_type<tc>, window_params = [{transform_indices = @transform_0, window_bounds = array<i64: 4, 784>}, {transform_indices = @transform_1, window_bounds = array<i64: 4, 784>}, {transform_indices = @transform_2, window_bounds = array<i64: 4, 784>}]} {
    %c0 = arith.constant 0 : index
    %c0_0 = arith.constant 0 : index
    %0 = vector.load %arg1[%c0, %c0_0] : memref<4x784xf32, #tpu.memory_space<vmem>>, vector<4x784xf32>
    %c0_1 = arith.constant 0 : index
    %c0_2 = arith.constant 0 : index
    %1 = vector.load %arg2[%c0_1, %c0_2] : memref<4x784xf32, #tpu.memory_space<vmem>>, vector<4x784xf32>
    %2 = math.log %1 : vector<4x784xf32>
    %cst = arith.constant -1.000000e+02 : f32
    %3 = vector.broadcast %cst : f32 to vector<4x784xf32>
    %4 = arith.maximumf %2, %3 : vector<4x784xf32>
    %cst_3 = arith.constant 1.000000e+00 : f32
    %5 = vector.broadcast %cst_3 : f32 to vector<4x784xf32>
    %6 = arith.subf %5, %1 : vector<4x784xf32>
    %7 = math.log %6 : vector<4x784xf32>
    %cst_4 = arith.constant -1.000000e+02 : f32
    %8 = vector.broadcast %cst_4 : f32 to vector<4x784xf32>
    %9 = arith.maximumf %7, %8 : vector<4x784xf32>
    %10 = arith.mulf %0, %4 : vector<4x784xf32>
    %cst_5 = arith.constant 1.000000e+00 : f32
    %11 = vector.broadcast %cst_5 : f32 to vector<4x784xf32>
    %12 = arith.subf %11, %0 : vector<4x784xf32>
    %13 = arith.mulf %12, %9 : vector<4x784xf32>
    %14 = arith.addf %10, %13 : vector<4x784xf32>
    %cst_6 = arith.constant 0.000000e+00 : f32
    %15 = vector.broadcast %cst_6 : f32 to vector<4x784xf32>
    %16 = arith.subf %15, %14 : vector<4x784xf32>
    %c0_7 = arith.constant 0 : index
    %c0_8 = arith.constant 0 : index
    %17 = vector.load %arg3[%c0_7, %c0_8] : memref<4x784xf32, #tpu.memory_space<vmem>>, vector<4x784xf32>
    tpu.vector_store %arg3[%c0_7, %c0_8], %16 {strides = array<i32>} : memref<4x784xf32, #tpu.memory_space<vmem>>, vector<4x784xf32>,
    return
  }
  func.func @transform_0(%arg0: i32) -> (i32, i32) {
    %c0_i32 = arith.constant 0 : i32
    %c0_i32_0 = arith.constant 0 : i32
    return %arg0, %c0_i32 : i32, i32
  }
  func.func @transform_1(%arg0: i32) -> (i32, i32) {
    %c0_i32 = arith.constant 0 : i32
    %c0_i32_0 = arith.constant 0 : i32
    return %arg0, %c0_i32 : i32, i32
  }
  func.func @transform_2(%arg0: i32) -> (i32, i32) {
    %c0_i32 = arith.constant 0 : i32
    %c0_i32_0 = arith.constant 0 : i32
    return %arg0, %c0_i32 : i32, i32
  }
}

</mosaic_0001>

<llo_original>
// kernel: tpu_custom_call.1
$region0: #{tpu_custom_call.1}
  #allocation0 [shape = 'u32[]', space=smem, size = 0x4, offset = 0x4, fixed_abs, tag = 'smem constant byte address 0x4 - core index']
  #allocation1 [shape = 'u32[144,128]{1,0:T(1,128)}', space=vmem, size = 0x12000, scoped, tag = 'internal scratch']
  %s0 = inlined_call_operand.hbm [shape: f32[4,784], index: 0, kind: input, shape index: {}]
  %s1 = inlined_call_operand.hbm [shape: f32[4,784], index: 1, kind: input, shape index: {}]
  %s2 = inlined_call_operand.hbm [shape: f32[4,784], index: 2, kind: output, shape index: {}]
  %s3 = sld [smem:[#allocation0]]
  $region26: #{tpu_custom_call.1} parent=0
    _
  %s5 = ssub.s32 1, %s3
  %s6 = scalar_select 0, %s5, %s3
  $region1: #{tpu_custom_call.1} parent=0
    #allocation2 [shape = 'u8[14336]{0}', space=vmem, size = 0x3800, scoped, tag = 'input window, operand 0, single buffered']
    #allocation3 [shape = 's32[1]{0}', space=sflag, size = 0x4, scoped, tag = 'scoped memory for tpu_custom_call.1']
    #allocation4 [shape = 's32[1]{0}', space=sflag, size = 0x4, scoped, tag = 'scoped memory for tpu_custom_call.1']
    #allocation5 [shape = 'u8[14336]{0}', space=vmem, size = 0x3800, scoped, tag = 'input window, operand 1, single buffered']
    #allocation6 [shape = 's32[1]{0}', space=sflag, size = 0x4, scoped, tag = 'scoped memory for tpu_custom_call.1']
    #allocation7 [shape = 'u8[14336]{0}', space=vmem, size = 0x3800, scoped, tag = 'output window, operand 0, single buffered']
    %7 = vsyncpa [#allocation3], 0
    %8 = vsyncpa [#allocation6], 0
    %9 = vsyncpa [#allocation4], 0
    // Predicated region
    $region2: #{tpu_custom_call.1} parent=1 // pred_check
      _
    $region3: #{tpu_custom_call.1} parent=1 // pred_check_branch
      %11 = sbr.rel (0) target = $region5
    $region4: #{tpu_custom_call.1} parent=1 // pred_region
      %s13 = ssub.s32 448, 448
      %14 = vsyncadd [#allocation3], %s13
      %s16 = sshll.u32 [#allocation2], 4
      %s17 = int_to_ptr.vmem [resolvable:$true] %s16
      %19 = dma.hbm_to_vmem [thread:$0]  %s0, 448, %s17, [#allocation3]
    $region5: #{tpu_custom_call.1} parent=1 // pred_fallthru
      _
    // Predicated region
    $region6: #{tpu_custom_call.1} parent=1 // pred_check
      _
    $region7: #{tpu_custom_call.1} parent=1 // pred_check_branch
      %21 = sbr.rel (0) target = $region9
    $region8: #{tpu_custom_call.1} parent=1 // pred_region
      %s23 = ssub.s32 448, 448
      %24 = vsyncadd [#allocation6], %s23
      %s26 = sshll.u32 [#allocation5], 4
      %s27 = int_to_ptr.vmem [resolvable:$true] %s26
      %29 = dma.hbm_to_vmem [thread:$0]  %s1, 448, %s27, [#allocation6]
    $region9: #{tpu_custom_call.1} parent=1 // pred_fallthru
      _
    // Predicated region
    $region10: #{tpu_custom_call.1} parent=1 // pred_check
      _
    $region11: #{tpu_custom_call.1} parent=1 // pred_check_branch
      %31 = sbr.rel (0) target = $region13
    $region12: #{tpu_custom_call.1} parent=1 // pred_region
      %32 = dma.done [#allocation3], 448
    $region13: #{tpu_custom_call.1} parent=1 // pred_fallthru
      _
    // Predicated region
    $region14: #{tpu_custom_call.1} parent=1 // pred_check
      _
    $region15: #{tpu_custom_call.1} parent=1 // pred_check_branch
      %34 = sbr.rel (0) target = $region17
    $region16: #{tpu_custom_call.1} parent=1 // pred_region
      %35 = dma.done [#allocation6], 448
    $region17: #{tpu_custom_call.1} parent=1 // pred_fallthru
      _
    %v36 = vld [vmem:[#allocation2] sm:$0xff]
    %v37 = vld [vmem:[#allocation2 + $0x8] sm:$0xff]
    %v38 = vld [vmem:[#allocation2 + $0x10] sm:$0xff]
    %v39 = vld [vmem:[#allocation2 + $0x18] sm:$0xf]
    %v40 = vld [vmem:[#allocation5] sm:$0xff]
    %v41 = vld [vmem:[#allocation5 + $0x8] sm:$0xff]
    %v42 = vld [vmem:[#allocation5 + $0x10] sm:$0xff]
    %v43 = vld [vmem:[#allocation5 + $0x18] sm:$0xf]
    %v44 = vlog2.pop %v40
    %v45 = vmul.f32 %v44, 0.6931472
    %v46 = vlog2.pop %v41
    %v47 = vmul.f32 %v46, 0.6931472
    %v48 = vlog2.pop %v42
    %v49 = vmul.f32 %v48, 0.6931472
    %v50 = vlog2.pop %v43
    %v51 = vmul.f32 %v50, 0.6931472
    %v52 = vmax.f32 %v45, -100.0
    %v53 = vmax.f32 %v47, -100.0
    %v54 = vmax.f32 %v49, -100.0
    %v55 = vmax.f32 %v51, -100.0
    %v56 = vsub.f32 1.0, %v40
    %v57 = vsub.f32 1.0, %v41
    %v58 = vsub.f32 1.0, %v42
    %v59 = vsub.f32 1.0, %v43
    %v60 = vlog2.pop %v56
    %v61 = vmul.f32 %v60, 0.6931472
    %v62 = vlog2.pop %v57
    %v63 = vmul.f32 %v62, 0.6931472
    %v64 = vlog2.pop %v58
    %v65 = vmul.f32 %v64, 0.6931472
    %v66 = vlog2.pop %v59
    %v67 = vmul.f32 %v66, 0.6931472
    %v68 = vmax.f32 %v61, -100.0
    %v69 = vmax.f32 %v63, -100.0
    %v70 = vmax.f32 %v65, -100.0
    %v71 = vmax.f32 %v67, -100.0
    %v72 = vmul.f32 %v36, %v52
    %v73 = vmul.f32 %v37, %v53
    %v74 = vmul.f32 %v38, %v54
    %v75 = vmul.f32 %v39, %v55
    %v76 = vsub.f32 1.0, %v36
    %v77 = vsub.f32 1.0, %v37
    %v78 = vsub.f32 1.0, %v38
    %v79 = vsub.f32 1.0, %v39
    %v80 = vmul.f32 %v76, %v68
    %v81 = vmul.f32 %v77, %v69
    %v82 = vmul.f32 %v78, %v70
    %v83 = vmul.f32 %v79, %v71
    %v84 = vadd.f32 %v72, %v80
    %v85 = vadd.f32 %v73, %v81
    %v86 = vadd.f32 %v74, %v82
    %v87 = vadd.f32 %v75, %v83
    %v88 = vsub.f32 0.0, %v84
    %v89 = vsub.f32 0.0, %v85
    %v90 = vsub.f32 0.0, %v86
    %v91 = vsub.f32 0.0, %v87
    %92 = vst [vmem:[#allocation7] sm:$0xff] %v88
    %93 = vst [vmem:[#allocation7 + $0x8] sm:$0xff] %v89
    %94 = vst [vmem:[#allocation7 + $0x10] sm:$0xff] %v90
    %vm95 = vcmask 125952
    %96 = vst.msk [vmem:[#allocation7 + $0x18] sm:$0xf] %vm95, %v91
    // Predicated region
    $region18: #{tpu_custom_call.1} parent=1 // pred_check
      _
    $region19: #{tpu_custom_call.1} parent=1 // pred_check_branch
      %98 = sbr.rel (0) target = $region21
    $region20: #{tpu_custom_call.1} parent=1 // pred_region
      %s100 = ssub.s32 448, 448
      %101 = vsyncadd [#allocation4], %s100
      %s103 = sshll.u32 [#allocation7], 4
      %s104 = int_to_ptr.vmem [resolvable:$true] %s103
      %106 = dma.vmem_to_hbm [thread:$0]  %s104, 448, %s2, [#allocation4]
    $region21: #{tpu_custom_call.1} parent=1 // pred_fallthru
      _
    // Predicated region
    $region22: #{tpu_custom_call.1} parent=1 // pred_check
      _
    $region23: #{tpu_custom_call.1} parent=1 // pred_check_branch
      %108 = sbr.rel (0) target = $region25
    $region24: #{tpu_custom_call.1} parent=1 // pred_region
      %109 = dma.done [#allocation4], 448
    $region25: #{tpu_custom_call.1} parent=1 // pred_fallthru
      _
    %110 = vsyncpa [#allocation3], 1
    %111 = vsyncpa [#allocation6], 1
    %112 = vsyncpa [#allocation4], 1

</llo_original>
